<compile_context>
chip_gen: v7x
topology: tpu7x:2x2x1
jax: 0.10.0
libtpu: 0.0.40
codegen_flags: <defaults>
</compile_context>

<pallas_src>
import jax
import jax.numpy as jnp
from jax.experimental import pallas as pl
from jax.experimental.pallas import tpu as pltpu

_LANES = 128            # f32 vreg lane width
_SUBLANES = 8           # f32 sublanes per vreg
_MAX_TILE_ROWS = 2048   # 2048 x 128 x 4 B = 1 MiB per block (fits all scoped-VMEM defaults)


def _linear_kernel(w_ref, b_ref, x_ref, o_ref):
    # w_ref, b_ref: SMEM (1,) scalars; x_ref / o_ref: VMEM (tile_rows, 128).
    o_ref[...] = x_ref[...] * w_ref[0] + b_ref[0]


def _round_up(n, m):
    return ((n + m - 1) // m) * m


def _pick_tile_rows(rows):
    # Aim for >= 4 grid steps when the batch allows it (keeps both v7x
    # TensorCores fed and lets each double-buffer); cap blocks at 1 MiB.
    t = _round_up(max(pl.cdiv(rows, 4), 1), _SUBLANES)
    return max(_SUBLANES, min(_MAX_TILE_ROWS, t))


def _run_slab(x_slab, w_scalar, b_scalar, *, alias_input):
    rows, _ = x_slab.shape
    tile_rows = _pick_tile_rows(rows)
    grid = (pl.cdiv(rows, tile_rows),)          # ragged last block is masked by Pallas
    extra = {"input_output_aliases": {2: 0}} if alias_input else {}
    return pl.pallas_call(
        _linear_kernel,
        out_shape=jax.ShapeDtypeStruct((rows, _LANES), x_slab.dtype),
        grid_spec=pl.GridSpec(
            grid=grid,
            in_specs=[
                pl.BlockSpec(memory_space=pltpu.MemorySpace.SMEM),    # weight scalar
                pl.BlockSpec(memory_space=pltpu.MemorySpace.SMEM),    # bias scalar
                pl.BlockSpec((tile_rows, _LANES), lambda i: (i, 0)),  # x slab tile
            ],
            out_specs=pl.BlockSpec((tile_rows, _LANES), lambda i: (i, 0)),
        ),
        compiler_params=pltpu.CompilerParams(
            dimension_semantics=("parallel",),
        ),
        **extra,
    )(w_scalar, b_scalar, x_slab)


def _line_network_forward_impl(x, weight, bias):
    """y = x @ weight.T + bias; weight (1, 1), bias (1,); x: (B, 1) -> (B, 1)."""
    B, F = x.shape
    assert F == 1 and weight.shape == (1, 1) and bias.shape == (1,)

    x = x.astype(jnp.float32)
    w_scalar = weight.reshape((1,)).astype(jnp.float32)
    b_scalar = bias.astype(jnp.float32)

    if B % _LANES == 0 and B >= _SUBLANES * _LANES:
        # Zero-copy path: (B, 1) -> (B // 128, 128) is a pure bitcast, so there
        # is no wrapper-side pad or slice; any ragged last row-block of the grid
        # is masked inside the kernel.
        rows = B // _LANES
        y_slab = _run_slab(x.reshape((rows, _LANES)), w_scalar, b_scalar,
                           alias_input=False)
        return y_slab.reshape((B, 1))

    # General path: pad the flat batch only up to whole (8, 128) vregs
    # (< 1024 elements of waste), compute on the lane-dense slab, slice the
    # valid prefix back out.
    # TODO(synk): the pad + slice each cost one extra HBM pass over x / y for
    # ragged B; a manual-DMA (memory_space=pl.ANY) kernel could remove them.
    rows = _round_up(pl.cdiv(B, _LANES), _SUBLANES)
    padded = rows * _LANES
    x_slab = jnp.pad(x.reshape((B,)), (0, padded - B)).reshape((rows, _LANES))
    y_slab = _run_slab(x_slab, w_scalar, b_scalar, alias_input=True)
    return y_slab.reshape((padded,))[:B].reshape((B, 1))


line_network_forward = jax.jit(_line_network_forward_impl)


if __name__ == "__main__":
    key = jax.random.PRNGKey(0)
    k_w, k_b, k_x1, k_x2, k_x3 = jax.random.split(key, 5)

    # nn.Linear(1, 1) init: weight (1, 1), bias (1,) ~ U[-1, 1] (fan_in = 1).
    weight = jax.random.uniform(k_w, (1, 1), dtype=jnp.float32, minval=-1.0, maxval=1.0)
    bias = jax.random.uniform(k_b, (1,), dtype=jnp.float32, minval=-1.0, maxval=1.0)

    def check(x):
        y = line_network_forward(x, weight, bias)
        jax.block_until_ready(y)
        y_ref = x @ weight.T + bias
        assert y.shape == x.shape
        assert jnp.allclose(y, y_ref, atol=1e-6, rtol=1e-6)

    # Small batch (padded path, single block).
    check(jax.random.normal(k_x1, (8, 1), dtype=jnp.float32))
    # Ragged batch (padded path, 4-step grid with masked last block).
    check(jax.random.normal(k_x2, (7000, 1), dtype=jnp.float32))
    # 128-aligned batch (zero-copy bitcast path, 4-step parallel grid).
    check(jax.random.normal(k_x3, (4096, 1), dtype=jnp.float32))

    print("KERNEL_OK")
</pallas_src>

<mosaic_0001>
module attributes {stable_mosaic.version = 11 : i64} {
  func.func @_linear_kernel(%arg0: i32, %arg1: memref<1xf32, #tpu.memory_space<smem>>, %arg2: memref<1xf32, #tpu.memory_space<smem>>, %arg3: memref<8x128xf32, #tpu.memory_space<vmem>>, %arg4: memref<8x128xf32, #tpu.memory_space<vmem>>) attributes {dimension_semantics = [#tpu.dimension_semantics<parallel>], iteration_bounds = array<i64: 1>, scalar_prefetch = 0 : i64, scratch_operands = 0 : i64, tpu.core_type = #tpu.core_type<tc>, window_params = [{transform_indices = @transform_0, window_bounds = array<i64: 1>}, {transform_indices = @transform_1, window_bounds = array<i64: 1>}, {transform_indices = @transform_2, window_bounds = array<i64: 8, 128>}, {transform_indices = @transform_3, window_bounds = array<i64: 8, 128>}]} {
    %c0 = arith.constant 0 : index
    %c0_0 = arith.constant 0 : index
    %0 = vector.load %arg3[%c0, %c0_0] : memref<8x128xf32, #tpu.memory_space<vmem>>, vector<8x128xf32>
    %c0_1 = arith.constant 0 : index
    %1 = memref.load %arg1[%c0_1] : memref<1xf32, #tpu.memory_space<smem>>
    %2 = vector.broadcast %1 : f32 to vector<8x128xf32>
    %3 = arith.mulf %0, %2 : vector<8x128xf32>
    %c0_2 = arith.constant 0 : index
    %4 = memref.load %arg2[%c0_2] : memref<1xf32, #tpu.memory_space<smem>>
    %5 = vector.broadcast %4 : f32 to vector<8x128xf32>
    %6 = arith.addf %3, %5 : vector<8x128xf32>
    %c0_3 = arith.constant 0 : index
    %c0_4 = arith.constant 0 : index
    %7 = vector.load %arg4[%c0_3, %c0_4] : memref<8x128xf32, #tpu.memory_space<vmem>>, vector<8x128xf32>
    tpu.vector_store %arg4[%c0_3, %c0_4], %6 {strides = array<i32>} : memref<8x128xf32, #tpu.memory_space<vmem>>, vector<8x128xf32>,
    return
  }
  func.func @transform_0(%arg0: i32) -> i32 {
    %c0_i32 = arith.constant 0 : i32
    %c0_i32_0 = arith.constant 0 : i32
    return %c0_i32 : i32
  }
  func.func @transform_1(%arg0: i32) -> i32 {
    %c0_i32 = arith.constant 0 : i32
    %c0_i32_0 = arith.constant 0 : i32
    return %c0_i32 : i32
  }
  func.func @transform_2(%arg0: i32) -> (i32, i32) {
    %c0_i32 = arith.constant 0 : i32
    %c0_i32_0 = arith.constant 0 : i32
    return %arg0, %c0_i32 : i32, i32
  }
  func.func @transform_3(%arg0: i32) -> (i32, i32) {
    %c0_i32 = arith.constant 0 : i32
    %c0_i32_0 = arith.constant 0 : i32
    return %arg0, %c0_i32 : i32, i32
  }
}

</mosaic_0001>

<llo_original>
// kernel: _line_network_forward_impl.1
$region0: #{_line_network_forward_impl.1}
  #allocation0 [shape = 'u32[]', space=smem, size = 0x4, offset = 0x4, fixed_abs, tag = 'smem constant byte address 0x4 - core index']
  #allocation1 [shape = 'u32[144,128]{1,0:T(1,128)}', space=vmem, size = 0x12000, scoped, tag = 'internal scratch']
  #allocation2 [shape = 'f32[1]{0:T(128)S(6)}', space=smem, size = 0x200, scoped, tag = 'scoped memory for _line_network_forward_impl.1']
  #allocation3 [shape = 'f32[1]{0:T(128)S(6)}', space=smem, size = 0x200, scoped, tag = 'scoped memory for _line_network_forward_impl.1']
  %s0 = inlined_call_operand.<no memory space> [shape: f32[1], index: 0, kind: input, shape index: {}]
  %s1 = inlined_call_operand.<no memory space> [shape: f32[1], index: 1, kind: input, shape index: {}]
  %s2 = inlined_call_operand.vmem [shape: f32[8,128], index: 2, kind: input, shape index: {}, may-alias: {2,3}]
  %s3 = inlined_call_operand.vmem [shape: f32[8,128], index: 3, kind: output, shape index: {}, may-alias: {2,3}]
  %s4 = sld [smem:[#allocation0]]
  $region22: #{_line_network_forward_impl.1} parent=0
    _
  %s6 = ssub.s32 1, %s4
  %s7 = scalar_select 0, %s6, %s4
  %8 = sst [smem:[#allocation2]] %s0
  %9 = sst [smem:[#allocation3]] %s1
  // Predicated region
  $region2: #{_line_network_forward_impl.1} parent=0 // pred_check
    _
  $region3: #{_line_network_forward_impl.1} parent=0 // pred_check_branch
    %11 = sbr.rel (0) target = $region5
  $region4: #{_line_network_forward_impl.1} parent=0 // pred_region
    _
  $region5: #{_line_network_forward_impl.1} parent=0 // pred_fallthru
    _
  // Predicated region
  $region6: #{_line_network_forward_impl.1} parent=0 // pred_check
    _
  $region7: #{_line_network_forward_impl.1} parent=0 // pred_check_branch
    %13 = sbr.rel (0) target = $region9
  $region8: #{_line_network_forward_impl.1} parent=0 // pred_region
    _
  $region9: #{_line_network_forward_impl.1} parent=0 // pred_fallthru
    _
  // Predicated region
  $region10: #{_line_network_forward_impl.1} parent=0 // pred_check
    _
  $region11: #{_line_network_forward_impl.1} parent=0 // pred_check_branch
    %15 = sbr.rel (0) target = $region13
  $region12: #{_line_network_forward_impl.1} parent=0 // pred_region
    _
  $region13: #{_line_network_forward_impl.1} parent=0 // pred_fallthru
    _
  %v16 = vld [vmem:[%s2] sm:$0xff]
  %s17 = sld [smem:[#allocation2]]
  %v18 = vstv %s17
  %v19 = vmul.f32 %v16, %v18
  %s20 = sld [smem:[#allocation3]]
  %v21 = vstv %s20
  %v22 = vadd.f32 %v19, %v21
  %23 = vst [vmem:[%s3] sm:$0xff] %v22
  // Predicated region
  $region14: #{_line_network_forward_impl.1} parent=0 // pred_check
    _
  $region15: #{_line_network_forward_impl.1} parent=0 // pred_check_branch
    %25 = sbr.rel (0) target = $region17
  $region16: #{_line_network_forward_impl.1} parent=0 // pred_region
    _
  $region17: #{_line_network_forward_impl.1} parent=0 // pred_fallthru
    _
  // Predicated region
  $region18: #{_line_network_forward_impl.1} parent=0 // pred_check
    _
  $region19: #{_line_network_forward_impl.1} parent=0 // pred_check_branch
    %27 = sbr.rel (0) target = $region21
  $region20: #{_line_network_forward_impl.1} parent=0 // pred_region
    _
  $region21: #{_line_network_forward_impl.1} parent=0 // pred_fallthru
    _

</llo_original>
